<compile_context>
chip_gen: v7x
topology: tpu7x:2x2x1
jax: 0.10.0
libtpu: 0.0.40
codegen_flags: <defaults>
</compile_context>

<pallas_src>
import functools

import jax
import jax.numpy as jnp
from jax.experimental import pallas as pl
from jax.experimental.pallas import tpu as pltpu

_LANES = 128
_BYPASS_BYTES = 128 * 1024  # below this, skip Pallas entirely


def _fix_binary_kernel(params_ref, x_ref, o_ref):
    # params_ref (SMEM): [min_value, max_value], f32.
    mn = params_ref[0].astype(x_ref.dtype)
    mx = params_ref[1].astype(x_ref.dtype)
    x = x_ref[...]
    # Equivalent to torch.where(x > max, max, x) then torch.where(x < min, min, x),
    # including NaN pass-through (minimum/maximum propagate NaN).
    x = jnp.minimum(x, mx)
    x = jnp.maximum(x, mn)
    o_ref[...] = x


def _default_tile_rows(device_kind: str) -> int:
    kind = device_kind.lower()
    if "v5" in kind:
        return 2048  # 1 MiB/spec f32: safe under v5e's 16 MiB scoped-VMEM default
    if "v7" in kind:
        return 8192  # 4 MiB/spec: amortizes per-step overhead at 3.2 TB/s HBM
    return 4096      # v6e and others: 2 MiB/spec


@functools.partial(jax.jit, static_argnames=("tile_rows", "force_pallas"))
def fix_binary_forward(x, params, *, tile_rows=None, force_pallas=False):
    """FixBinary forward: clamp(x, params[0], params[1]) elementwise."""
    orig_shape = x.shape
    n_elem = x.size
    itemsize = jnp.dtype(x.dtype).itemsize

    # Small-input bypass: one fused XLA op, no custom-call dispatch.
    if not force_pallas and n_elem * itemsize < _BYPASS_BYTES:
        mn = params[0].astype(x.dtype)
        mx = params[1].astype(x.dtype)
        return jnp.maximum(jnp.minimum(x, mx), mn)

    device_kind = jax.devices()[0].device_kind
    if tile_rows is None:
        tile_rows = _default_tile_rows(device_kind)

    # dtype-aware sublane quantum: f32 -> 8 rows, bf16 -> 16, int8/fp8 -> 32.
    quantum = max(8, 32 // itemsize)

    rows = pl.cdiv(n_elem, _LANES)
    rows_pad = -(-rows // quantum) * quantum       # pad only to the sublane quantum
    pad = rows_pad * _LANES - n_elem
    if pad == 0:
        x2d = x.reshape(rows_pad, _LANES)          # fast path: lane-dense, no copy
    else:
        x2d = jnp.pad(x.reshape(-1), (0, pad)).reshape(rows_pad, _LANES)

    tr = min(-(-tile_rows // quantum) * quantum, rows_pad)
    # v7x has two TensorCores: keep >=2 "parallel" grid steps when there is
    # enough work so both cores get a share.
    if "v7" in device_kind.lower() and rows_pad >= 2 * quantum and rows_pad <= tr:
        tr = -(-(rows_pad // 2) // quantum) * quantum
    grid = pl.cdiv(rows_pad, tr)                   # partial last block is masked

    out2d = pl.pallas_call(
        _fix_binary_kernel,
        out_shape=jax.ShapeDtypeStruct((rows_pad, _LANES), x.dtype),
        grid=(grid,),
        in_specs=[
            pl.BlockSpec(memory_space=pltpu.MemorySpace.SMEM),   # [min, max]
            pl.BlockSpec((tr, _LANES), lambda i: (i, 0)),
        ],
        out_specs=pl.BlockSpec((tr, _LANES), lambda i: (i, 0)),
        input_output_aliases={1: 0},               # in-place when x is donatable
        compiler_params=pltpu.CompilerParams(
            dimension_semantics=("parallel",)),
        cost_estimate=pl.CostEstimate(
            flops=2 * n_elem,
            transcendentals=0,
            bytes_accessed=2 * n_elem * itemsize),
    )(params, x2d)

    if pad == 0:
        return out2d.reshape(orig_shape)
    return out2d.reshape(-1)[:n_elem].reshape(orig_shape)


if __name__ == "__main__":
    key = jax.random.PRNGKey(0)
    # NCHW input; scale so values fall on both sides of [-1, 1].
    x = jax.random.normal(key, (2, 4, 16, 16), dtype=jnp.float32) * 2.0

    # FixBinary(min_value=-1, max_value=1); params stacked once, reused per call.
    min_value = jnp.float32(-1.0)
    max_value = jnp.float32(1.0)
    params = jnp.stack([min_value, max_value])

    def reference(v):
        r = jnp.where(v > max_value, max_value, v)
        return jnp.where(r < min_value, min_value, r)

    # 1) Pallas path (forced; at 8 KiB the default wrapper would bypass).
    out_pallas = jax.block_until_ready(
        fix_binary_forward(x, params, force_pallas=True))
    assert out_pallas.shape == x.shape
    assert bool(jnp.array_equal(out_pallas, reference(x)))

    # 2) Default wrapper (small-input XLA bypass).
    out_bypass = jax.block_until_ready(fix_binary_forward(x, params))
    assert bool(jnp.array_equal(out_bypass, reference(x)))

    # 3) Ragged, non-lane-aligned shape through the Pallas pad/mask path.
    x_ragged = jax.random.normal(
        jax.random.PRNGKey(1), (3, 5, 7), dtype=jnp.float32) * 3.0
    out_ragged = jax.block_until_ready(
        fix_binary_forward(x_ragged, params, force_pallas=True))
    assert out_ragged.shape == x_ragged.shape
    assert bool(jnp.array_equal(out_ragged, reference(x_ragged)))

    # 4) NaN pass-through matches the torch.where ordering.
    x_nan = x.at[0, 0, 0, 0].set(jnp.nan)
    out_nan = jax.block_until_ready(
        fix_binary_forward(x_nan, params, force_pallas=True))
    ref_nan = reference(x_nan)
    same = (out_nan == ref_nan) | (jnp.isnan(out_nan) & jnp.isnan(ref_nan))
    assert bool(jnp.all(same))

    # TODO(synk): backward/STE gradient path (Variable(x.data - origin.data) +
    # origin) is autograd-only; only the forward clamp is implemented here.
    print("KERNEL_OK")
</pallas_src>

<mosaic_0001>
module attributes {stable_mosaic.version = 11 : i64} {
  func.func @_fix_binary_kernel(%arg0: i32, %arg1: memref<2xf32, #tpu.memory_space<smem>>, %arg2: memref<16x128xf32, #tpu.memory_space<vmem>>, %arg3: memref<16x128xf32, #tpu.memory_space<vmem>>) attributes {dimension_semantics = [#tpu.dimension_semantics<parallel>], iteration_bounds = array<i64: 1>, scalar_prefetch = 0 : i64, scratch_operands = 0 : i64, tpu.core_type = #tpu.core_type<tc>, window_params = [{transform_indices = @transform_0, window_bounds = array<i64: 2>}, {transform_indices = @transform_1, window_bounds = array<i64: 16, 128>}, {transform_indices = @transform_2, window_bounds = array<i64: 16, 128>}]} {
    %c0 = arith.constant 0 : index
    %0 = memref.load %arg1[%c0] : memref<2xf32, #tpu.memory_space<smem>>
    %c1 = arith.constant 1 : index
    %1 = memref.load %arg1[%c1] : memref<2xf32, #tpu.memory_space<smem>>
    %c0_0 = arith.constant 0 : index
    %c0_1 = arith.constant 0 : index
    %2 = vector.load %arg2[%c0_0, %c0_1] : memref<16x128xf32, #tpu.memory_space<vmem>>, vector<16x128xf32>
    %3 = vector.broadcast %1 : f32 to vector<16x128xf32>
    %4 = arith.minimumf %2, %3 : vector<16x128xf32>
    %5 = vector.broadcast %0 : f32 to vector<16x128xf32>
    %6 = arith.maximumf %4, %5 : vector<16x128xf32>
    %c0_2 = arith.constant 0 : index
    %c0_3 = arith.constant 0 : index
    %7 = vector.load %arg3[%c0_2, %c0_3] : memref<16x128xf32, #tpu.memory_space<vmem>>, vector<16x128xf32>
    tpu.vector_store %arg3[%c0_2, %c0_3], %6 {strides = array<i32>} : memref<16x128xf32, #tpu.memory_space<vmem>>, vector<16x128xf32>,
    return
  }
  func.func @transform_0(%arg0: i32) -> i32 {
    %c0_i32 = arith.constant 0 : i32
    %c0_i32_0 = arith.constant 0 : i32
    return %c0_i32 : i32
  }
  func.func @transform_1(%arg0: i32) -> (i32, i32) {
    %c0_i32 = arith.constant 0 : i32
    %c0_i32_0 = arith.constant 0 : i32
    return %arg0, %c0_i32 : i32, i32
  }
  func.func @transform_2(%arg0: i32) -> (i32, i32) {
    %c0_i32 = arith.constant 0 : i32
    %c0_i32_0 = arith.constant 0 : i32
    return %arg0, %c0_i32 : i32, i32
  }
}

</mosaic_0001>

<llo_original>
// kernel: fix_binary_forward.1
$region0: #{fix_binary_forward.1}
  #allocation0 [shape = 'u32[]', space=smem, size = 0x4, offset = 0x4, fixed_abs, tag = 'smem constant byte address 0x4 - core index']
  #allocation1 [shape = 'u32[144,128]{1,0:T(1,128)}', space=vmem, size = 0x12000, scoped, tag = 'internal scratch']
  %s0 = inlined_call_operand.vmem [shape: f32[2], index: 0, kind: input, shape index: {}]
  %s1 = inlined_call_operand.vmem [shape: f32[16,128], index: 1, kind: input, shape index: {}, may-alias: {1,2}]
  %s2 = inlined_call_operand.vmem [shape: f32[16,128], index: 2, kind: output, shape index: {}, may-alias: {1,2}]
  %s3 = sld [smem:[#allocation0]]
  $region22: #{fix_binary_forward.1} parent=0
    _
  %s5 = ssub.s32 1, %s3
  %s6 = scalar_select 0, %s5, %s3
  $region1: #{fix_binary_forward.1} parent=0
    #allocation2 [shape = 'u8[512]{0}', space=smem, size = 0x200, scoped, tag = 'input window, operand 0, single buffered']
    #allocation3 [shape = 's32[1]{0}', space=sflag, size = 0x4, scoped, tag = 'scoped memory for fix_binary_forward.1']
    %7 = vsyncpa [#allocation3], 0
    // Predicated region
    $region2: #{fix_binary_forward.1} parent=1 // pred_check
      _
    $region3: #{fix_binary_forward.1} parent=1 // pred_check_branch
      %9 = sbr.rel (0) target = $region5
    $region4: #{fix_binary_forward.1} parent=1 // pred_region
      %s11 = ssub.s32 16, 16
      %12 = vsyncadd [#allocation3], %s11
      %s14 = sshll.u32 %s0, 4
      %s15 = int_to_ptr.vmem [resolvable:$true] %s14
      %17 = dma.vmem_to_smem %s15, 16, [#allocation2], [#allocation3]
    $region5: #{fix_binary_forward.1} parent=1 // pred_fallthru
      _
    // Predicated region
    $region6: #{fix_binary_forward.1} parent=1 // pred_check
      _
    $region7: #{fix_binary_forward.1} parent=1 // pred_check_branch
      %19 = sbr.rel (0) target = $region9
    $region8: #{fix_binary_forward.1} parent=1 // pred_region
      _
    $region9: #{fix_binary_forward.1} parent=1 // pred_fallthru
      _
    // Predicated region
    $region10: #{fix_binary_forward.1} parent=1 // pred_check
      _
    $region11: #{fix_binary_forward.1} parent=1 // pred_check_branch
      %21 = sbr.rel (0) target = $region13
    $region12: #{fix_binary_forward.1} parent=1 // pred_region
      %22 = dma.done [#allocation3], 16
    $region13: #{fix_binary_forward.1} parent=1 // pred_fallthru
      _
    %23 = sfence
    %s24 = sld [smem:[#allocation2]]
    %s25 = sld [smem:[#allocation2 + $0x1]]
    %v26 = vld [vmem:[%s1] sm:$0xff]
    %v27 = vld [vmem:[%s1 + $0x8] sm:$0xff]
    %v28 = vstv %s25
    %v29 = vmin.f32 %v26, %v28
    %v30 = vmin.f32 %v27, %v28
    %v31 = vstv %s24
    %v32 = vmax.f32 %v29, %v31
    %v33 = vmax.f32 %v30, %v31
    %34 = vst [vmem:[%s2] sm:$0xff] %v32
    %35 = vst [vmem:[%s2 + $0x8] sm:$0xff] %v33
    // Predicated region
    $region14: #{fix_binary_forward.1} parent=1 // pred_check
      _
    $region15: #{fix_binary_forward.1} parent=1 // pred_check_branch
      %37 = sbr.rel (0) target = $region17
    $region16: #{fix_binary_forward.1} parent=1 // pred_region
      _
    $region17: #{fix_binary_forward.1} parent=1 // pred_fallthru
      _
    // Predicated region
    $region18: #{fix_binary_forward.1} parent=1 // pred_check
      _
    $region19: #{fix_binary_forward.1} parent=1 // pred_check_branch
      %39 = sbr.rel (0) target = $region21
    $region20: #{fix_binary_forward.1} parent=1 // pred_region
      _
    $region21: #{fix_binary_forward.1} parent=1 // pred_fallthru
      _
    %40 = vsyncpa [#allocation3], 1

</llo_original>
